<compile_context>
chip_gen: v7x
topology: tpu7x:2x2x1
jax: 0.10.0
libtpu: 0.0.40
codegen_flags: <defaults>
</compile_context>

<pallas_src>
import functools

import jax
import jax.numpy as jnp
from jax.experimental import pallas as pl
from jax.experimental.pallas import tpu as pltpu

EPS = 1e-5


def _layernorm(x, gamma, beta):
    """LayerNorm over last axis (PyTorch semantics: biased variance, eps=1e-5).

    Single-pass statistics: sum(x) and sum(x*x) are independent cross-lane
    reductions, shortening the XLU dependency chain vs. mean-then-centered
    variance."""
    n = x.shape[-1]
    s = jnp.sum(x, axis=-1, keepdims=True)
    ss = jnp.sum(x * x, axis=-1, keepdims=True)
    mean = s * (1.0 / n)
    var = jnp.maximum(ss * (1.0 / n) - mean * mean, 0.0)
    inv = jax.lax.rsqrt(var + EPS)
    return (x - mean) * inv * gamma + beta


def _forecaster_kernel(
    th_ref,    # (BB, Din)      f32  flattened trajectory history block
    ep_ref,    # (M*BB, 2)      f32  end points, m-major / b-minor rows
    w1_ref,    # (Din, 64)      bf16
    b1_ref,    # (1, 64)        f32
    g1_ref,    # (1, 64)        f32  LayerNorm(64) gamma
    be1_ref,   # (1, 64)        f32  LayerNorm(64) beta
    w2a_ref,   # (64, 128)      bf16 decoder weight, encoder part
    w2b_ref,   # (2, 128)       f32  decoder weight, end-point part
    b2_ref,    # (1, 128)       f32
    g2_ref,    # (1, 128)       f32  LayerNorm(128) gamma
    be2_ref,   # (1, 128)       f32  LayerNorm(128) beta
    w3a_ref,   # (128, Fpad)    bf16 forecaster weight, decoder part (col-padded)
    w3b_ref,   # (2, Fpad)      f32  forecaster weight, end-point part (col-padded)
    b3_ref,    # (1, Fpad)      f32  (col-padded)
    out_ref,   # (M*BB, Fpad)   f32  lane-dense output slab
    *,
    M: int,
):
    x = th_ref[...]                                    # (BB, Din) f32
    ep = ep_ref[...]                                   # (M*BB, 2) f32
    BB = x.shape[0]

    # ---- encoder: Linear -> LayerNorm -> ReLU ----                  (BB, 64)
    enc = jnp.dot(x.astype(jnp.bfloat16), w1_ref[...],
                  preferred_element_type=jnp.float32) + b1_ref[...]
    enc = jnp.maximum(_layernorm(enc, g1_ref[...], be1_ref[...]), 0.0)

    # ---- decoder: split-weight linear; encoder part computed once per batch
    #      row, then replicated M times.  m-major replication = M whole
    #      sublane-aligned (BB, 128) tiles -> no cross-(8,128) relayout
    #      when BB % 8 == 0.
    dec_enc = jnp.dot(enc.astype(jnp.bfloat16), w2a_ref[...],
                      preferred_element_type=jnp.float32)             # (BB, 128)
    H = dec_enc.shape[-1]
    dec_enc_exp = jnp.broadcast_to(dec_enc[None, :, :], (M, BB, H)).reshape(M * BB, H)
    w2b = w2b_ref[...]
    ep0 = ep[:, 0:1]
    ep1 = ep[:, 1:2]
    dec = dec_enc_exp + ep0 * w2b[0:1, :] + ep1 * w2b[1:2, :] + b2_ref[...]
    dec = jnp.maximum(_layernorm(dec, g2_ref[...], be2_ref[...]), 0.0)  # (M*BB, 128)

    # ---- forecaster: split-weight linear, lane-dense Fpad columns ----
    out = jnp.dot(dec.astype(jnp.bfloat16), w3a_ref[...],
                  preferred_element_type=jnp.float32)                  # (M*BB, Fpad)
    w3b = w3b_ref[...]
    out = out + ep0 * w3b[0:1, :] + ep1 * w3b[1:2, :] + b3_ref[...]
    out_ref[...] = out.astype(out_ref.dtype)


def _round_up(x: int, m: int) -> int:
    return -(-x // m) * m


def _choose_batch_block(B: int, M: int) -> int:
    """Pick BB so BB*M (the row count of all heavy intermediates) is ~2K rows
    (multiple of 8), keeping several live (rows,128) f32 temporaries plus
    double-buffered I/O comfortably inside v7x's 64 MiB VMEM, while ensuring
    >= 2 grid steps (megacore sharding + pipelining) when the batch allows."""
    TARGET_ROWS = 2048
    bb = max(8, (TARGET_ROWS // max(M, 1)) // 8 * 8)
    if B < 16:
        return B                      # tiny batch: one block == full arrays
    min_steps = 2 if B < 64 else 4
    bb = min(bb, max(8, _round_up(-(-B // min_steps), 8)))
    return bb


def trajectory_forecaster(traj_hist, end_point, params, trajectory_future_length):
    """traj_hist: (B, T_hist, F) f32; end_point: (B, M, 2) f32."""
    B, T_hist, Fin = traj_hist.shape
    M = end_point.shape[1]
    Din = T_hist * Fin
    Fout = trajectory_future_length * 2
    Fpad = _round_up(Fout, 128)                     # lane-dense output width

    BB = _choose_batch_block(B, M)
    nblk = pl.cdiv(B, BB)
    Bpad = nblk * BB

    traj_flat = traj_hist.reshape(B, Din)           # nn.Flatten()
    ep = end_point
    if Bpad != B:                                   # zero-pad: LN-safe, sliced off later
        traj_flat = jnp.pad(traj_flat, ((0, Bpad - B), (0, 0)))
        ep = jnp.pad(ep, ((0, Bpad - B), (0, 0), (0, 0)))

    # Row ordering expected by the kernel: blk-major, m-major, b-minor.
    ep_rows = (ep.reshape(nblk, BB, M, 2)
                 .transpose(0, 2, 1, 3)
                 .reshape(nblk * M * BB, 2))

    # Matmul weights in bf16 (MXU-native); forecaster weights zero-padded to Fpad.
    w1 = params["w1"].astype(jnp.bfloat16)
    w2a = params["w2a"].astype(jnp.bfloat16)
    w3a = jnp.pad(params["w3a"], ((0, 0), (0, Fpad - Fout))).astype(jnp.bfloat16)
    w3b = jnp.pad(params["w3b"], ((0, 0), (0, Fpad - Fout)))
    b3 = jnp.pad(params["b3"], ((0, 0), (0, Fpad - Fout)))

    weights = (
        w1, params["b1"], params["g1"], params["be1"],
        w2a, params["w2b"], params["b2"], params["g2"], params["be2"],
        w3a, w3b, b3,
    )

    def full_spec(arr):
        return pl.BlockSpec(arr.shape, lambda i: (0,) * arr.ndim)

    in_specs = (
        [pl.BlockSpec((BB, Din), lambda i: (i, 0)),          # trajectory block
         pl.BlockSpec((M * BB, 2), lambda i: (i, 0))]        # end-point block
        + [full_spec(w) for w in weights]                    # weights resident
    )
    out_specs = pl.BlockSpec((M * BB, Fpad), lambda i: (i, 0))

    weight_bytes = sum(int(w.size) * w.dtype.itemsize for w in weights)

    # Explicit scoped-VMEM budget: double-buffered in/out blocks + resident
    # weights + headroom for the (rows,128) f32 intermediates.
    block_in_bytes = BB * Din * 4 + M * BB * 2 * 4
    block_out_bytes = M * BB * Fpad * 4
    interm_bytes = 8 * M * BB * 128 * 4 + 4 * BB * (Din + 64 + 128) * 4
    vmem_limit = int(2 * (block_in_bytes + block_out_bytes)
                     + weight_bytes + interm_bytes + (4 << 20))
    vmem_limit = max(16 << 20, min(vmem_limit, 64 << 20))    # stay under v7x physical

    flops = (2 * Bpad * Din * 64 + 2 * Bpad * 64 * 128
             + 2 * Bpad * M * 128 * Fpad + 16 * Bpad * M * 128)
    bytes_accessed = (4 * (Bpad * Din + Bpad * M * 2 + Bpad * M * Fpad)
                      + weight_bytes)
    cost = pl.CostEstimate(flops=flops, transcendentals=Bpad + Bpad * M,
                           bytes_accessed=bytes_accessed)

    out = pl.pallas_call(
        functools.partial(_forecaster_kernel, M=M),
        out_shape=jax.ShapeDtypeStruct((nblk * M * BB, Fpad), jnp.float32),
        grid=(nblk,),
        in_specs=in_specs,
        out_specs=out_specs,
        compiler_params=pltpu.CompilerParams(
            dimension_semantics=("parallel",),
            vmem_limit_bytes=vmem_limit),
        cost_estimate=cost,
    )(traj_flat, ep_rows, *weights)

    # Undo the (blk, m, b) row ordering, drop padding, drop padded lanes.
    out = (out.reshape(nblk, M, BB, Fpad)
              .transpose(0, 2, 1, 3)
              .reshape(Bpad, M, Fpad))[:B, :, :Fout]
    return out.reshape(B, M, trajectory_future_length, 2)


def _reference(traj_hist, end_point, params):
    """Pure-JAX f32 reference of the PyTorch forward (concatenated weights)."""
    B = traj_hist.shape[0]
    M = end_point.shape[1]
    x = traj_hist.reshape(B, -1)
    enc = x @ params["w1"] + params["b1"]
    enc = jnp.maximum(_layernorm(enc, params["g1"], params["be1"]), 0.0)
    enc_exp = jnp.broadcast_to(enc[:, None, :], (B, M, 64))
    w2 = jnp.concatenate([params["w2a"], params["w2b"]], axis=0)      # (66, 128)
    h = jnp.concatenate([enc_exp, end_point], axis=-1)                # (B, M, 66)
    dec = jnp.einsum("bmd,dk->bmk", h, w2) + params["b2"]
    dec = jnp.maximum(_layernorm(dec, params["g2"], params["be2"]), 0.0)
    w3 = jnp.concatenate([params["w3a"], params["w3b"]], axis=0)      # (130, Fout)
    h2 = jnp.concatenate([dec, end_point], axis=-1)                   # (B, M, 130)
    out = jnp.einsum("bmd,dk->bmk", h2, w3) + params["b3"]
    return out.reshape(B, M, -1, 2)


def make_params(key, in_features, trajectory_hist_length, trajectory_future_length):
    din = in_features * trajectory_hist_length
    fout = trajectory_future_length * 2
    ks = jax.random.split(key, 8)
    scale = 0.05
    return {
        # encoder Linear(din, 64) + LayerNorm(64)
        "w1": scale * jax.random.normal(ks[0], (din, 64), jnp.float32),
        "b1": scale * jax.random.normal(ks[1], (1, 64), jnp.float32),
        "g1": jnp.ones((1, 64), jnp.float32),
        "be1": jnp.zeros((1, 64), jnp.float32),
        # decoder Linear(66, 128) split into (64,128) + (2,128), + LayerNorm(128)
        "w2a": scale * jax.random.normal(ks[2], (64, 128), jnp.float32),
        "w2b": scale * jax.random.normal(ks[3], (2, 128), jnp.float32),
        "b2": scale * jax.random.normal(ks[4], (1, 128), jnp.float32),
        "g2": jnp.ones((1, 128), jnp.float32),
        "be2": jnp.zeros((1, 128), jnp.float32),
        # forecaster Linear(130, fout) split into (128,fout) + (2,fout)
        "w3a": scale * jax.random.normal(ks[5], (128, fout), jnp.float32),
        "w3b": scale * jax.random.normal(ks[6], (2, fout), jnp.float32),
        "b3": scale * jax.random.normal(ks[7], (1, fout), jnp.float32),
    }


if __name__ == "__main__":
    # Small, module-consistent shapes.
    B = 2                      # batch
    in_features = 4            # features per trajectory step
    T_hist = 8                 # trajectory_hist_length
    T_future = 6               # trajectory_future_length
    M = 4                      # number of candidate end points

    key = jax.random.PRNGKey(0)
    k_p, k_x, k_e = jax.random.split(key, 3)

    params = make_params(k_p, in_features, T_hist, T_future)
    traj_hist = jax.random.normal(k_x, (B, T_hist, in_features), jnp.float32)
    end_point = jax.random.normal(k_e, (B, M, 2), jnp.float32)

    out = trajectory_forecaster(traj_hist, end_point, params, T_future)
    out = jax.block_until_ready(out)

    ref = _reference(traj_hist, end_point, params)
    assert out.shape == (B, M, T_future, 2), out.shape
    # Tolerance accounts for bf16 MXU operands (f32 accumulation, f32 LN/epilogue).
    assert jnp.allclose(out, ref, rtol=2e-2, atol=2e-2), "mismatch vs reference"

    print("KERNEL_OK")
</pallas_src>

<mosaic_0001>
module attributes {stable_mosaic.version = 11 : i64} {
  func.func @_forecaster_kernel(%arg0: i32, %arg1: memref<2x32xf32, #tpu.memory_space<vmem>>, %arg2: memref<8x2xf32, #tpu.memory_space<vmem>>, %arg3: memref<32x64xbf16, #tpu.memory_space<vmem>>, %arg4: memref<1x64xf32, #tpu.memory_space<vmem>>, %arg5: memref<1x64xf32, #tpu.memory_space<vmem>>, %arg6: memref<1x64xf32, #tpu.memory_space<vmem>>, %arg7: memref<64x128xbf16, #tpu.memory_space<vmem>>, %arg8: memref<2x128xf32, #tpu.memory_space<vmem>>, %arg9: memref<1x128xf32, #tpu.memory_space<vmem>>, %arg10: memref<1x128xf32, #tpu.memory_space<vmem>>, %arg11: memref<1x128xf32, #tpu.memory_space<vmem>>, %arg12: memref<128x128xbf16, #tpu.memory_space<vmem>>, %arg13: memref<2x128xf32, #tpu.memory_space<vmem>>, %arg14: memref<1x128xf32, #tpu.memory_space<vmem>>, %arg15: memref<8x128xf32, #tpu.memory_space<vmem>>) attributes {dimension_semantics = [#tpu.dimension_semantics<parallel>], iteration_bounds = array<i64: 1>, scalar_prefetch = 0 : i64, scratch_operands = 0 : i64, tpu.core_type = #tpu.core_type<tc>, window_params = [{transform_indices = @transform_0, window_bounds = array<i64: 2, 32>}, {transform_indices = @transform_1, window_bounds = array<i64: 8, 2>}, {pipeline_mode = #tpu.pipeline_mode<synchronous>, transform_indices = @transform_2, window_bounds = array<i64: 32, 64>}, {pipeline_mode = #tpu.pipeline_mode<synchronous>, transform_indices = @transform_3, window_bounds = array<i64: 1, 64>}, {pipeline_mode = #tpu.pipeline_mode<synchronous>, transform_indices = @transform_4, window_bounds = array<i64: 1, 64>}, {pipeline_mode = #tpu.pipeline_mode<synchronous>, transform_indices = @transform_5, window_bounds = array<i64: 1, 64>}, {pipeline_mode = #tpu.pipeline_mode<synchronous>, transform_indices = @transform_6, window_bounds = array<i64: 64, 128>}, {pipeline_mode = #tpu.pipeline_mode<synchronous>, transform_indices = @transform_7, window_bounds = array<i64: 2, 128>}, {pipeline_mode = #tpu.pipeline_mode<synchronous>, transform_indices = @transform_8, window_bounds = array<i64: 1, 128>}, {pipeline_mode = #tpu.pipeline_mode<synchronous>, transform_indices = @transform_9, window_bounds = array<i64: 1, 128>}, {pipeline_mode = #tpu.pipeline_mode<synchronous>, transform_indices = @transform_10, window_bounds = array<i64: 1, 128>}, {pipeline_mode = #tpu.pipeline_mode<synchronous>, transform_indices = @transform_11, window_bounds = array<i64: 128, 128>}, {pipeline_mode = #tpu.pipeline_mode<synchronous>, transform_indices = @transform_12, window_bounds = array<i64: 2, 128>}, {pipeline_mode = #tpu.pipeline_mode<synchronous>, transform_indices = @transform_13, window_bounds = array<i64: 1, 128>}, {transform_indices = @transform_14, window_bounds = array<i64: 8, 128>}]} {
    %c0 = arith.constant 0 : index
    %c0_0 = arith.constant 0 : index
    %0 = vector.load %arg1[%c0, %c0_0] : memref<2x32xf32, #tpu.memory_space<vmem>>, vector<2x32xf32>
    %c0_1 = arith.constant 0 : index
    %c0_2 = arith.constant 0 : index
    %1 = vector.load %arg2[%c0_1, %c0_2] : memref<8x2xf32, #tpu.memory_space<vmem>>, vector<8x2xf32>
    %2 = arith.truncf %0 : vector<2x32xf32> to vector<2x32xbf16>
    %c0_3 = arith.constant 0 : index
    %c0_4 = arith.constant 0 : index
    %3 = vector.load %arg3[%c0_3, %c0_4] : memref<32x64xbf16, #tpu.memory_space<vmem>>, vector<32x64xbf16>
    %cst = arith.constant dense<0.000000e+00> : vector<2x64xf32>
    %4 = tpu.matmul %2, %3, %cst {dimension_numbers = #tpu.dot_dimension_numbers<[1], [0], [0], [1], [0, 0, 1, 1], [], []>} : vector<2x32xbf16>, vector<32x64xbf16>, vector<2x64xf32> -> vector<2x64xf32>
    %c0_5 = arith.constant 0 : index
    %c0_6 = arith.constant 0 : index
    %5 = vector.load %arg4[%c0_5, %c0_6] : memref<1x64xf32, #tpu.memory_space<vmem>>, vector<1x64xf32>
    %6 = vector.broadcast %5 : vector<1x64xf32> to vector<2x64xf32>
    %7 = arith.addf %4, %6 : vector<2x64xf32>
    %c0_7 = arith.constant 0 : index
    %c0_8 = arith.constant 0 : index
    %8 = vector.load %arg5[%c0_7, %c0_8] : memref<1x64xf32, #tpu.memory_space<vmem>>, vector<1x64xf32>
    %c0_9 = arith.constant 0 : index
    %c0_10 = arith.constant 0 : index
    %9 = vector.load %arg6[%c0_9, %c0_10] : memref<1x64xf32, #tpu.memory_space<vmem>>, vector<1x64xf32>
    %cst_11 = arith.constant dense<0.000000e+00> : vector<2xf32>
    %10 = vector.multi_reduction <add>, %7, %cst_11 [1] : vector<2x64xf32> to vector<2xf32>
    %11 = vector.shape_cast %10 : vector<2xf32> to vector<2x1xf32>
    %12 = arith.mulf %7, %7 : vector<2x64xf32>
    %cst_12 = arith.constant dense<0.000000e+00> : vector<2xf32>
    %13 = vector.multi_reduction <add>, %12, %cst_12 [1] : vector<2x64xf32> to vector<2xf32>
    %14 = vector.shape_cast %13 : vector<2xf32> to vector<2x1xf32>
    %cst_13 = arith.constant 1.562500e-02 : f32
    %15 = vector.broadcast %cst_13 : f32 to vector<2x1xf32>
    %16 = arith.mulf %11, %15 : vector<2x1xf32>
    %cst_14 = arith.constant 1.562500e-02 : f32
    %17 = vector.broadcast %cst_14 : f32 to vector<2x1xf32>
    %18 = arith.mulf %14, %17 : vector<2x1xf32>
    %19 = arith.mulf %16, %16 : vector<2x1xf32>
    %20 = arith.subf %18, %19 : vector<2x1xf32>
    %cst_15 = arith.constant 0.000000e+00 : f32
    %21 = vector.broadcast %cst_15 : f32 to vector<2x1xf32>
    %22 = arith.maximumf %20, %21 : vector<2x1xf32>
    %cst_16 = arith.constant 9.99999974E-6 : f32
    %23 = vector.broadcast %cst_16 : f32 to vector<2x1xf32>
    %24 = arith.addf %22, %23 : vector<2x1xf32>
    %25 = math.rsqrt %24 : vector<2x1xf32>
    %26 = vector.broadcast %16 : vector<2x1xf32> to vector<2x64xf32>
    %27 = arith.subf %7, %26 : vector<2x64xf32>
    %28 = vector.broadcast %25 : vector<2x1xf32> to vector<2x64xf32>
    %29 = arith.mulf %27, %28 : vector<2x64xf32>
    %30 = vector.broadcast %8 : vector<1x64xf32> to vector<2x64xf32>
    %31 = arith.mulf %29, %30 : vector<2x64xf32>
    %32 = vector.broadcast %9 : vector<1x64xf32> to vector<2x64xf32>
    %33 = arith.addf %31, %32 : vector<2x64xf32>
    %cst_17 = arith.constant 0.000000e+00 : f32
    %34 = vector.broadcast %cst_17 : f32 to vector<2x64xf32>
    %35 = arith.maximumf %33, %34 : vector<2x64xf32>
    %36 = arith.truncf %35 : vector<2x64xf32> to vector<2x64xbf16>
    %c0_18 = arith.constant 0 : index
    %c0_19 = arith.constant 0 : index
    %37 = vector.load %arg7[%c0_18, %c0_19] : memref<64x128xbf16, #tpu.memory_space<vmem>>, vector<64x128xbf16>
    %cst_20 = arith.constant dense<0.000000e+00> : vector<2x128xf32>
    %38 = tpu.matmul %36, %37, %cst_20 {dimension_numbers = #tpu.dot_dimension_numbers<[1], [0], [0], [1], [0, 0, 1, 1], [], []>} : vector<2x64xbf16>, vector<64x128xbf16>, vector<2x128xf32> -> vector<2x128xf32>
    %39 = vector.shape_cast %38 : vector<2x128xf32> to vector<1x2x128xf32>
    %40 = vector.shape_cast %39 : vector<1x2x128xf32> to vector<1x2x128xf32>
    %41 = vector.broadcast %40 : vector<1x2x128xf32> to vector<4x2x128xf32>
    %42 = vector.shape_cast %41 : vector<4x2x128xf32> to vector<8x128xf32>
    %c0_21 = arith.constant 0 : index
    %c0_22 = arith.constant 0 : index
    %43 = vector.load %arg8[%c0_21, %c0_22] : memref<2x128xf32, #tpu.memory_space<vmem>>, vector<2x128xf32>
    %44 = vector.extract_strided_slice %1 {offsets = [0, 0], sizes = [8, 1], strides = [1, 1]} : vector<8x2xf32> to vector<8x1xf32>
    %45 = vector.extract_strided_slice %1 {offsets = [0, 1], sizes = [8, 1], strides = [1, 1]} : vector<8x2xf32> to vector<8x1xf32>
    %46 = vector.extract_strided_slice %43 {offsets = [0, 0], sizes = [1, 128], strides = [1, 1]} : vector<2x128xf32> to vector<1x128xf32>
    %47 = vector.broadcast %44 : vector<8x1xf32> to vector<8x128xf32>
    %48 = vector.broadcast %46 : vector<1x128xf32> to vector<8x128xf32>
    %49 = arith.mulf %47, %48 : vector<8x128xf32>
    %50 = arith.addf %42, %49 : vector<8x128xf32>
    %51 = vector.extract_strided_slice %43 {offsets = [1, 0], sizes = [1, 128], strides = [1, 1]} : vector<2x128xf32> to vector<1x128xf32>
    %52 = vector.broadcast %45 : vector<8x1xf32> to vector<8x128xf32>
    %53 = vector.broadcast %51 : vector<1x128xf32> to vector<8x128xf32>
    %54 = arith.mulf %52, %53 : vector<8x128xf32>
    %55 = arith.addf %50, %54 : vector<8x128xf32>
    %c0_23 = arith.constant 0 : index
    %c0_24 = arith.constant 0 : index
    %56 = vector.load %arg9[%c0_23, %c0_24] : memref<1x128xf32, #tpu.memory_space<vmem>>, vector<1x128xf32>
    %57 = vector.broadcast %56 : vector<1x128xf32> to vector<8x128xf32>
    %58 = arith.addf %55, %57 : vector<8x128xf32>
    %c0_25 = arith.constant 0 : index
    %c0_26 = arith.constant 0 : index
    %59 = vector.load %arg10[%c0_25, %c0_26] : memref<1x128xf32, #tpu.memory_space<vmem>>, vector<1x128xf32>
    %c0_27 = arith.constant 0 : index
    %c0_28 = arith.constant 0 : index
    %60 = vector.load %arg11[%c0_27, %c0_28] : memref<1x128xf32, #tpu.memory_space<vmem>>, vector<1x128xf32>
    %cst_29 = arith.constant dense<0.000000e+00> : vector<8xf32>
    %61 = vector.multi_reduction <add>, %58, %cst_29 [1] : vector<8x128xf32> to vector<8xf32>
    %62 = vector.shape_cast %61 : vector<8xf32> to vector<8x1xf32>
    %63 = arith.mulf %58, %58 : vector<8x128xf32>
    %cst_30 = arith.constant dense<0.000000e+00> : vector<8xf32>
    %64 = vector.multi_reduction <add>, %63, %cst_30 [1] : vector<8x128xf32> to vector<8xf32>
    %65 = vector.shape_cast %64 : vector<8xf32> to vector<8x1xf32>
    %cst_31 = arith.constant 7.812500e-03 : f32
    %66 = vector.broadcast %cst_31 : f32 to vector<8x1xf32>
    %67 = arith.mulf %62, %66 : vector<8x1xf32>
    %cst_32 = arith.constant 7.812500e-03 : f32
    %68 = vector.broadcast %cst_32 : f32 to vector<8x1xf32>
    %69 = arith.mulf %65, %68 : vector<8x1xf32>
    %70 = arith.mulf %67, %67 : vector<8x1xf32>
    %71 = arith.subf %69, %70 : vector<8x1xf32>
    %cst_33 = arith.constant 0.000000e+00 : f32
    %72 = vector.broadcast %cst_33 : f32 to vector<8x1xf32>
    %73 = arith.maximumf %71, %72 : vector<8x1xf32>
    %cst_34 = arith.constant 9.99999974E-6 : f32
    %74 = vector.broadcast %cst_34 : f32 to vector<8x1xf32>
    %75 = arith.addf %73, %74 : vector<8x1xf32>
    %76 = math.rsqrt %75 : vector<8x1xf32>
    %77 = vector.broadcast %67 : vector<8x1xf32> to vector<8x128xf32>
    %78 = arith.subf %58, %77 : vector<8x128xf32>
    %79 = vector.broadcast %76 : vector<8x1xf32> to vector<8x128xf32>
    %80 = arith.mulf %78, %79 : vector<8x128xf32>
    %81 = vector.broadcast %59 : vector<1x128xf32> to vector<8x128xf32>
    %82 = arith.mulf %80, %81 : vector<8x128xf32>
    %83 = vector.broadcast %60 : vector<1x128xf32> to vector<8x128xf32>
    %84 = arith.addf %82, %83 : vector<8x128xf32>
    %cst_35 = arith.constant 0.000000e+00 : f32
    %85 = vector.broadcast %cst_35 : f32 to vector<8x128xf32>
    %86 = arith.maximumf %84, %85 : vector<8x128xf32>
    %87 = arith.truncf %86 : vector<8x128xf32> to vector<8x128xbf16>
    %c0_36 = arith.constant 0 : index
    %c0_37 = arith.constant 0 : index
    %88 = vector.load %arg12[%c0_36, %c0_37] : memref<128x128xbf16, #tpu.memory_space<vmem>>, vector<128x128xbf16>
    %cst_38 = arith.constant dense<0.000000e+00> : vector<8x128xf32>
    %89 = tpu.matmul %87, %88, %cst_38 {dimension_numbers = #tpu.dot_dimension_numbers<[1], [0], [0], [1], [0, 0, 1, 1], [], []>} : vector<8x128xbf16>, vector<128x128xbf16>, vector<8x128xf32> -> vector<8x128xf32>
    %c0_39 = arith.constant 0 : index
    %c0_40 = arith.constant 0 : index
    %90 = vector.load %arg13[%c0_39, %c0_40] : memref<2x128xf32, #tpu.memory_space<vmem>>, vector<2x128xf32>
    %91 = vector.extract_strided_slice %90 {offsets = [0, 0], sizes = [1, 128], strides = [1, 1]} : vector<2x128xf32> to vector<1x128xf32>
    %92 = vector.broadcast %44 : vector<8x1xf32> to vector<8x128xf32>
    %93 = vector.broadcast %91 : vector<1x128xf32> to vector<8x128xf32>
    %94 = arith.mulf %92, %93 : vector<8x128xf32>
    %95 = arith.addf %89, %94 : vector<8x128xf32>
    %96 = vector.extract_strided_slice %90 {offsets = [1, 0], sizes = [1, 128], strides = [1, 1]} : vector<2x128xf32> to vector<1x128xf32>
    %97 = vector.broadcast %45 : vector<8x1xf32> to vector<8x128xf32>
    %98 = vector.broadcast %96 : vector<1x128xf32> to vector<8x128xf32>
    %99 = arith.mulf %97, %98 : vector<8x128xf32>
    %100 = arith.addf %95, %99 : vector<8x128xf32>
    %c0_41 = arith.constant 0 : index
    %c0_42 = arith.constant 0 : index
    %101 = vector.load %arg14[%c0_41, %c0_42] : memref<1x128xf32, #tpu.memory_space<vmem>>, vector<1x128xf32>
    %102 = vector.broadcast %101 : vector<1x128xf32> to vector<8x128xf32>
    %103 = arith.addf %100, %102 : vector<8x128xf32>
    %c0_43 = arith.constant 0 : index
    %c0_44 = arith.constant 0 : index
    %104 = vector.load %arg15[%c0_43, %c0_44] : memref<8x128xf32, #tpu.memory_space<vmem>>, vector<8x128xf32>
    tpu.vector_store %arg15[%c0_43, %c0_44], %103 {strides = array<i32>} : memref<8x128xf32, #tpu.memory_space<vmem>>, vector<8x128xf32>,
    return
  }
  func.func @transform_0(%arg0: i32) -> (i32, i32) {
    %c0_i32 = arith.constant 0 : i32
    %c0_i32_0 = arith.constant 0 : i32
    return %arg0, %c0_i32 : i32, i32
  }
  func.func @transform_1(%arg0: i32) -> (i32, i32) {
    %c0_i32 = arith.constant 0 : i32
    %c0_i32_0 = arith.constant 0 : i32
    return %arg0, %c0_i32 : i32, i32
  }
  func.func @transform_2(%arg0: i32) -> (i32, i32) {
    %c0_i32 = arith.constant 0 : i32
    %c0_i32_0 = arith.constant 0 : i32
    %c0_i32_1 = arith.constant 0 : i32
    return %c0_i32, %c0_i32_0 : i32, i32
  }
  func.func @transform_3(%arg0: i32) -> (i32, i32) {
    %c0_i32 = arith.constant 0 : i32
    %c0_i32_0 = arith.constant 0 : i32
    %c0_i32_1 = arith.constant 0 : i32
    return %c0_i32, %c0_i32_0 : i32, i32
  }
  func.func @transform_4(%arg0: i32) -> (i32, i32) {
    %c0_i32 = arith.constant 0 : i32
    %c0_i32_0 = arith.constant 0 : i32
    %c0_i32_1 = arith.constant 0 : i32
    return %c0_i32, %c0_i32_0 : i32, i32
  }
  func.func @transform_5(%arg0: i32) -> (i32, i32) {
    %c0_i32 = arith.constant 0 : i32
    %c0_i32_0 = arith.constant 0 : i32
    %c0_i32_1 = arith.constant 0 : i32
    return %c0_i32, %c0_i32_0 : i32, i32
  }
  func.func @transform_6(%arg0: i32) -> (i32, i32) {
    %c0_i32 = arith.constant 0 : i32
    %c0_i32_0 = arith.constant 0 : i32
    %c0_i32_1 = arith.constant 0 : i32
    return %c0_i32, %c0_i32_0 : i32, i32
  }
  func.func @transform_7(%arg0: i32) -> (i32, i32) {
    %c0_i32 = arith.constant 0 : i32
    %c0_i32_0 = arith.constant 0 : i32
    %c0_i32_1 = arith.constant 0 : i32
    return %c0_i32, %c0_i32_0 : i32, i32
  }
  func.func @transform_8(%arg0: i32) -> (i32, i32) {
    %c0_i32 = arith.constant 0 : i32
    %c0_i32_0 = arith.constant 0 : i32
    %c0_i32_1 = arith.constant 0 : i32
    return %c0_i32, %c0_i32_0 : i32, i32
  }
  func.func @transform_9(%arg0: i32) -> (i32, i32) {
    %c0_i32 = arith.constant 0 : i32
    %c0_i32_0 = arith.constant 0 : i32
    %c0_i32_1 = arith.constant 0 : i32
    return %c0_i32, %c0_i32_0 : i32, i32
  }
  func.func @transform_10(%arg0: i32) -> (i32, i32) {
    %c0_i32 = arith.constant 0 : i32
    %c0_i32_0 = arith.constant 0 : i32
    %c0_i32_1 = arith.constant 0 : i32
    return %c0_i32, %c0_i32_0 : i32, i32
  }
  func.func @transform_11(%arg0: i32) -> (i32, i32) {
    %c0_i32 = arith.constant 0 : i32
    %c0_i32_0 = arith.constant 0 : i32
    %c0_i32_1 = arith.constant 0 : i32
    return %c0_i32, %c0_i32_0 : i32, i32
  }
  func.func @transform_12(%arg0: i32) -> (i32, i32) {
    %c0_i32 = arith.constant 0 : i32
    %c0_i32_0 = arith.constant 0 : i32
    %c0_i32_1 = arith.constant 0 : i32
    return %c0_i32, %c0_i32_0 : i32, i32
  }
  func.func @transform_13(%arg0: i32) -> (i32, i32) {
    %c0_i32 = arith.constant 0 : i32
    %c0_i32_0 = arith.constant 0 : i32
    %c0_i32_1 = arith.constant 0 : i32
    return %c0_i32, %c0_i32_0 : i32, i32
  }
  func.func @transform_14(%arg0: i32) -> (i32, i32) {
    %c0_i32 = arith.constant 0 : i32
    %c0_i32_0 = arith.constant 0 : i32
    return %arg0, %c0_i32 : i32, i32
  }
}

</mosaic_0001>

<llo_original>
// kernel: tpu_custom_call.1
$region0: #{tpu_custom_call.1}
  #allocation0 [shape = 'u32[]', space=smem, size = 0x4, offset = 0x4, fixed_abs, tag = 'smem constant byte address 0x4 - core index']
  #allocation1 [shape = 'u32[144,128]{1,0:T(1,128)}', space=vmem, size = 0x12000, scoped, tag = 'internal scratch']
  %s0 = inlined_call_operand.hbm [shape: f32[2,32], index: 0, kind: input, shape index: {}]
  %s1 = inlined_call_operand.vmem [shape: f32[8,2], index: 1, kind: input, shape index: {}]
  %s2 = inlined_call_operand.hbm [shape: bf16[32,64], index: 2, kind: input, shape index: {}]
  %s3 = inlined_call_operand.hbm [shape: f32[1,64], index: 3, kind: input, shape index: {}]
  %s4 = inlined_call_operand.hbm [shape: f32[1,64], index: 4, kind: input, shape index: {}]
  %s5 = inlined_call_operand.hbm [shape: f32[1,64], index: 5, kind: input, shape index: {}]
  %s6 = inlined_call_operand.vmem [shape: bf16[64,128], index: 6, kind: input, shape index: {}]
  %s7 = inlined_call_operand.vmem [shape: f32[2,128], index: 7, kind: input, shape index: {}]
  %s8 = inlined_call_operand.vmem [shape: f32[1,128], index: 8, kind: input, shape index: {}]
  %s9 = inlined_call_operand.vmem [shape: f32[1,128], index: 9, kind: input, shape index: {}]
  %s10 = inlined_call_operand.vmem [shape: f32[1,128], index: 10, kind: input, shape index: {}]
  %s11 = inlined_call_operand.hbm [shape: bf16[128,128], index: 11, kind: input, shape index: {}]
  %s12 = inlined_call_operand.vmem [shape: f32[2,128], index: 12, kind: input, shape index: {}]
  %s13 = inlined_call_operand.vmem [shape: f32[1,128], index: 13, kind: input, shape index: {}]
  %s14 = inlined_call_operand.hbm [shape: f32[8,128], index: 14, kind: output, shape index: {}]
  %s15 = sld [smem:[#allocation0]]
  $region90: #{tpu_custom_call.1} parent=0
    _
  %s17 = ssub.s32 1, %s15
  %s18 = scalar_select 0, %s17, %s15
  $region1: #{tpu_custom_call.1} parent=0
    #allocation2 [shape = 'u8[1024]{0}', space=vmem, size = 0x400, scoped, tag = 'input window, operand 0, single buffered']
    #allocation3 [shape = 's32[1]{0}', space=sflag, size = 0x4, scoped, tag = 'scoped memory for tpu_custom_call.1']
    #allocation4 [shape = 's32[1]{0}', space=sflag, size = 0x4, scoped, tag = 'scoped memory for tpu_custom_call.1']
    #allocation5 [shape = 'u8[8192]{0}', space=vmem, size = 0x2000, scoped, tag = 'input window, operand 2, single buffered']
    #allocation6 [shape = 's32[1]{0}', space=sflag, size = 0x4, scoped, tag = 'scoped memory for tpu_custom_call.1']
    #allocation7 [shape = 'u8[512]{0}', space=vmem, size = 0x400, scoped, tag = 'input window, operand 3, single buffered']
    #allocation8 [shape = 'u8[512]{0}', space=vmem, size = 0x400, scoped, tag = 'input window, operand 4, single buffered']
    #allocation9 [shape = 's32[1]{0}', space=sflag, size = 0x4, scoped, tag = 'scoped memory for tpu_custom_call.1']
    #allocation10 [shape = 'u8[512]{0}', space=vmem, size = 0x400, scoped, tag = 'input window, operand 5, single buffered']
    #allocation11 [shape = 'u8[32768]{0}', space=vmem, size = 0x8000, scoped, tag = 'input window, operand 11, single buffered']
    #allocation12 [shape = 's32[1]{0}', space=sflag, size = 0x4, scoped, tag = 'scoped memory for tpu_custom_call.1']
    #allocation13 [shape = 'u8[4096]{0}', space=vmem, size = 0x1000, scoped, tag = 'output window, operand 0, single buffered']
    %19 = vsyncpa [#allocation3], 0
    %20 = vsyncpa [#allocation6], 0
    %21 = vsyncpa [#allocation9], 0
    %22 = vsyncpa [#allocation12], 0
    %23 = vsyncpa [#allocation4], 0
    // Predicated region
    $region2: #{tpu_custom_call.1} parent=1 // pred_check
      _
    $region3: #{tpu_custom_call.1} parent=1 // pred_check_branch
      %25 = sbr.rel (0) target = $region5
    $region4: #{tpu_custom_call.1} parent=1 // pred_region
      %s27 = ssub.s32 32, 32
      %28 = vsyncadd [#allocation3], %s27
      %s30 = sshll.u32 [#allocation2], 4
      %s31 = int_to_ptr.vmem [resolvable:$true] %s30
      %33 = dma.hbm_to_vmem [thread:$0]  %s0, 32, %s31, [#allocation3]
    $region5: #{tpu_custom_call.1} parent=1 // pred_fallthru
      _
    // Predicated region
    $region6: #{tpu_custom_call.1} parent=1 // pred_check
      _
    $region7: #{tpu_custom_call.1} parent=1 // pred_check_branch
      %35 = sbr.rel (0) target = $region9
    $region8: #{tpu_custom_call.1} parent=1 // pred_region
      _
    $region9: #{tpu_custom_call.1} parent=1 // pred_fallthru
      _
    // Predicated region
    $region10: #{tpu_custom_call.1} parent=1 // pred_check
      _
    $region11: #{tpu_custom_call.1} parent=1 // pred_check_branch
      %37 = sbr.rel (0) target = $region13
    $region12: #{tpu_custom_call.1} parent=1 // pred_region
      %s39 = ssub.s32 256, 256
      %40 = vsyncadd [#allocation6], %s39
      %s41 = sshll.u32 [#allocation5], 4
      %s42 = int_to_ptr.vmem [resolvable:$true] %s41
      %47 = dma.hbm_to_vmem [thread:$0]  %s2, 256, %s42, [#allocation6], 64, 64, 4
    $region13: #{tpu_custom_call.1} parent=1 // pred_fallthru
      _
    // Predicated region
    $region14: #{tpu_custom_call.1} parent=1 // pred_check
      _
    $region15: #{tpu_custom_call.1} parent=1 // pred_check_branch
      %49 = sbr.rel (0) target = $region17
    $region16: #{tpu_custom_call.1} parent=1 // pred_region
      %s51 = ssub.s32 16, 16
      %52 = vsyncadd [#allocation6], %s51
      %s54 = sshll.u32 [#allocation7], 4
      %s55 = int_to_ptr.vmem [resolvable:$true] %s54
      %57 = dma.hbm_to_vmem [thread:$0]  %s3, 16, %s55, [#allocation6]
    $region17: #{tpu_custom_call.1} parent=1 // pred_fallthru
      _
    // Predicated region
    $region18: #{tpu_custom_call.1} parent=1 // pred_check
      _
    $region19: #{tpu_custom_call.1} parent=1 // pred_check_branch
      %59 = sbr.rel (0) target = $region21
    $region20: #{tpu_custom_call.1} parent=1 // pred_region
      %s61 = ssub.s32 16, 16
      %62 = vsyncadd [#allocation9], %s61
      %s64 = sshll.u32 [#allocation8], 4
      %s65 = int_to_ptr.vmem [resolvable:$true] %s64
      %67 = dma.hbm_to_vmem [thread:$0]  %s4, 16, %s65, [#allocation9]
    $region21: #{tpu_custom_call.1} parent=1 // pred_fallthru
      _
    // Predicated region
    $region22: #{tpu_custom_call.1} parent=1 // pred_check
      _
    $region23: #{tpu_custom_call.1} parent=1 // pred_check_branch
      %69 = sbr.rel (0) target = $region25
    $region24: #{tpu_custom_call.1} parent=1 // pred_region
      %s71 = ssub.s32 16, 16
      %72 = vsyncadd [#allocation9], %s71
      %s74 = sshll.u32 [#allocation10], 4
      %s75 = int_to_ptr.vmem [resolvable:$true] %s74
      %77 = dma.hbm_to_vmem [thread:$0]  %s5, 16, %s75, [#allocation9]
    $region25: #{tpu_custom_call.1} parent=1 // pred_fallthru
      _
    // Predicated region
    $region26: #{tpu_custom_call.1} parent=1 // pred_check
      _
    $region27: #{tpu_custom_call.1} parent=1 // pred_check_branch
      %79 = sbr.rel (0) target = $region29
    $region28: #{tpu_custom_call.1} parent=1 // pred_region
      _
    $region29: #{tpu_custom_call.1} parent=1 // pred_fallthru
      _
    // Predicated region
    $region30: #{tpu_custom_call.1} parent=1 // pred_check
      _
    $region31: #{tpu_custom_call.1} parent=1 // pred_check_branch
      %81 = sbr.rel (0) target = $region33
    $region32: #{tpu_custom_call.1} parent=1 // pred_region
      _
    $region33: #{tpu_custom_call.1} parent=1 // pred_fallthru
      _
    // Predicated region
    $region34: #{tpu_custom_call.1} parent=1 // pred_check
      _
    $region35: #{tpu_custom_call.1} parent=1 // pred_check_branch
      %83 = sbr.rel (0) target = $region37
    $region36: #{tpu_custom_call.1} parent=1 // pred_region
      _
    $region37: #{tpu_custom_call.1} parent=1 // pred_fallthru
      _
    // Predicated region
    $region38: #{tpu_custom_call.1} parent=1 // pred_check
      _
    $region39: #{tpu_custom_call.1} parent=1 // pred_check_branch
      %85 = sbr.rel (0) target = $region41
    $region40: #{tpu_custom_call.1} parent=1 // pred_region
      _
    $region41: #{tpu_custom_call.1} parent=1 // pred_fallthru
      _
    // Predicated region
    $region42: #{tpu_custom_call.1} parent=1 // pred_check
      _
    $region43: #{tpu_custom_call.1} parent=1 // pred_check_branch
      %87 = sbr.rel (0) target = $region45
    $region44: #{tpu_custom_call.1} parent=1 // pred_region
      _
    $region45: #{tpu_custom_call.1} parent=1 // pred_fallthru
      _
    // Predicated region
    $region46: #{tpu_custom_call.1} parent=1 // pred_check
      _
    $region47: #{tpu_custom_call.1} parent=1 // pred_check_branch
      %89 = sbr.rel (0) target = $region49
    $region48: #{tpu_custom_call.1} parent=1 // pred_region
      %s91 = ssub.s32 1024, 1024
      %92 = vsyncadd [#allocation12], %s91
      %s93 = sshll.u32 [#allocation11], 4
      %s94 = int_to_ptr.vmem [resolvable:$true] %s93
      %99 = dma.hbm_to_vmem [thread:$0]  %s11, 1024, %s94, [#allocation12], 64, 64, 4
    $region49: #{tpu_custom_call.1} parent=1 // pred_fallthru
      _
    // Predicated region
    $region50: #{tpu_custom_call.1} parent=1 // pred_check
      _
    $region51: #{tpu_custom_call.1} parent=1 // pred_check_branch
      %101 = sbr.rel (0) target = $region53
    $region52: #{tpu_custom_call.1} parent=1 // pred_region
      _
    $region53: #{tpu_custom_call.1} parent=1 // pred_fallthru
      _
    // Predicated region
    $region54: #{tpu_custom_call.1} parent=1 // pred_check
      _
    $region55: #{tpu_custom_call.1} parent=1 // pred_check_branch
      %103 = sbr.rel (0) target = $region57
    $region56: #{tpu_custom_call.1} parent=1 // pred_region
      _
    $region57: #{tpu_custom_call.1} parent=1 // pred_fallthru
      _
    // Predicated region
    $region58: #{tpu_custom_call.1} parent=1 // pred_check
      _
    $region59: #{tpu_custom_call.1} parent=1 // pred_check_branch
      %105 = sbr.rel (0) target = $region61
    $region60: #{tpu_custom_call.1} parent=1 // pred_region
      %106 = dma.done [#allocation3], 32
    $region61: #{tpu_custom_call.1} parent=1 // pred_fallthru
      _
    // Predicated region
    $region62: #{tpu_custom_call.1} parent=1 // pred_check
      _
    $region63: #{tpu_custom_call.1} parent=1 // pred_check_branch
      %108 = sbr.rel (0) target = $region65
    $region64: #{tpu_custom_call.1} parent=1 // pred_region
      %109 = dma.done [#allocation6], 256
    $region65: #{tpu_custom_call.1} parent=1 // pred_fallthru
      _
    // Predicated region
    $region66: #{tpu_custom_call.1} parent=1 // pred_check
      _
    $region67: #{tpu_custom_call.1} parent=1 // pred_check_branch
      %111 = sbr.rel (0) target = $region69
    $region68: #{tpu_custom_call.1} parent=1 // pred_region
      %112 = dma.done [#allocation6], 16
    $region69: #{tpu_custom_call.1} parent=1 // pred_fallthru
      _
    // Predicated region
    $region70: #{tpu_custom_call.1} parent=1 // pred_check
      _
    $region71: #{tpu_custom_call.1} parent=1 // pred_check_branch
      %114 = sbr.rel (0) target = $region73
    $region72: #{tpu_custom_call.1} parent=1 // pred_region
      %115 = dma.done [#allocation9], 16
    $region73: #{tpu_custom_call.1} parent=1 // pred_fallthru
      _
    // Predicated region
    $region74: #{tpu_custom_call.1} parent=1 // pred_check
      _
    $region75: #{tpu_custom_call.1} parent=1 // pred_check_branch
      %117 = sbr.rel (0) target = $region77
    $region76: #{tpu_custom_call.1} parent=1 // pred_region
      %118 = dma.done [#allocation9], 16
    $region77: #{tpu_custom_call.1} parent=1 // pred_fallthru
      _
    // Predicated region
    $region78: #{tpu_custom_call.1} parent=1 // pred_check
      _
    $region79: #{tpu_custom_call.1} parent=1 // pred_check_branch
      %120 = sbr.rel (0) target = $region81
    $region80: #{tpu_custom_call.1} parent=1 // pred_region
      %121 = dma.done [#allocation12], 1024
    $region81: #{tpu_custom_call.1} parent=1 // pred_fallthru
      _
    %v123 = vld [vmem:[#allocation2] sm:$0x3]
    %v124 = vld [vmem:[%s1] sm:$0xff]
    %v125 = vpack.c.bf16 %v123, %v123
    %v126 = vld [vmem:[#allocation5] sm:$0xf]
    %v127 = vld [vmem:[#allocation5 + $0x4] sm:$0xf]
    %v128 = vld [vmem:[#allocation5 + $0x8] sm:$0xf]
    %v129 = vld [vmem:[#allocation5 + $0xc] sm:$0xf]
    %v130 = vld [vmem:[#allocation7] sm:$0x1]
    %v132 = vlaneseq
    %v133 = vshrl.u32 %v132, 7
    %v134 = vsub.s32 0, %v133
    %v135 = vrot.slane %v130, %v134
    %v141 = vunpack.c.l.b16 %v126
    %v142 = vunpack.c.l.b16 %v127
    %v143 = vunpack.c.l.b16 %v128
    %v144 = vunpack.c.l.b16 %v129
    %v145 = vpack.c.b16 %v142, %v141
    %v146 = vpack.c.b16 %v144, %v143
    %vm149 = vcmask 261120
    %v151 = vsel %vm149, %v125, 0
    %153 = vmatprep.subr.bf16.mxu0 0
    %154 = vmatpush1.bf16.msra.mxu0 %v145
    %155 = vmatprep.subr.bf16.mxu0 0
    %156 = vmatpush1.bf16.msra.mxu0 %v146
    %157 = vmatprep.subr.bf16.mxu0 0
    %158 = vmatpush1.bf16.msra.mxu0 0
    %159 = vmatprep.subr.bf16.mxu0 0
    %160 = vmatpush1.bf16.msra.mxu0 0
    %161 = vmatprep.subr.bf16.mxu0 0
    %162 = vmatpush1.bf16.msra.mxu0 0
    %163 = vmatprep.subr.bf16.mxu0 0
    %164 = vmatpush1.bf16.msra.mxu0 0
    %165 = vmatprep.subr.bf16.mxu0 0
    %166 = vmatpush1.bf16.msra.mxu0 0
    %167 = vmatprep.subr.bf16.mxu0 0
    %168 = vmatpush1.bf16.msra.mxu0 0
    %169 = vmatprep.subr.bf16.mxu0 0
    %170 = vmatpush1.bf16.msra.mxu0 0
    %171 = vmatprep.subr.bf16.mxu0 0
    %172 = vmatpush1.bf16.msra.mxu0 0
    %173 = vmatprep.subr.bf16.mxu0 0
    %174 = vmatpush1.bf16.msra.mxu0 0
    %175 = vmatprep.subr.bf16.mxu0 0
    %176 = vmatpush1.bf16.msra.mxu0 0
    %177 = vmatprep.subr.bf16.mxu0 0
    %178 = vmatpush1.bf16.msra.mxu0 0
    %179 = vmatprep.subr.bf16.mxu0 0
    %180 = vmatpush1.bf16.msra.mxu0 0
    %181 = vmatprep.subr.bf16.mxu0 0
    %182 = vmatpush1.bf16.msra.mxu0 0
    %183 = vmatprep.subr.bf16.mxu0 0
    %184 = vmatpush1.bf16.msra.mxu0 0
    %185 = vmatprep.mubr.bf16.mxu0 0
    %186 = vmatmul.mubr.bf16.gmra.mrb[0].mxu0 %v151
    %v187 = vpop.f32.mrb[0].mxu0
    %v188 = vadd.f32 %v135, %v187
    %v189 = vpop.f32.mrb[0].mxu0
    %v190 = vpop.f32.mrb[0].mxu0
    %v191 = vpop.f32.mrb[0].mxu0
    %192 = vdwg.mxu0
    %v193 = vld [vmem:[#allocation8] sm:$0x1]
    %v194 = vld [vmem:[#allocation10] sm:$0x1]
    %vm195 = vcmask 517120
    %v196 = vsel %vm195, %v188, 0.0
    %197 = vadd.xlane.f32.xlu0 %v196
    %v198 = vpop.xlane.xlu0 %197
    %v199 = vmul.f32 %v188, %v188
    %v200 = vsel %vm195, %v199, 0.0
    %201 = vadd.xlane.f32.xlu0 %v200
    %v202 = vpop.xlane.xlu0 %201
    %v203 = vmul.f32 %v198, 0.015625
    %v204 = vmul.f32 %v202, 0.015625
    %v205 = vmul.f32 %v203, %v203
    %v206 = vsub.f32 %v204, %v205
    %v207 = vmax.f32 %v206, 0.0
    %v208 = vadd.f32 %v207, 1e-05
    %v209 = vrsqrt.pop %v208
    %v210 = vsub.f32 %v188, %v203
    %v211 = vmul.f32 %v210, %v209
    %v213 = vlaneseq
    %v214 = vshrl.u32 %v213, 7
    %v215 = vsub.s32 0, %v214
    %v216 = vrot.slane %v193, %v215
    %v218 = vmul.f32 %v211, %v216
    %v220 = vlaneseq
    %v221 = vshrl.u32 %v220, 7
    %v222 = vsub.s32 0, %v221
    %v223 = vrot.slane %v194, %v222
    %v225 = vadd.f32 %v218, %v223
    %v226 = vmax.f32 %v225, 0.0
    %v227 = vpack.c.bf16 %v226, %v226
    %v228 = vld [vmem:[%s6] sm:$0xf]
    %v229 = vld [vmem:[%s6 + $0x4] sm:$0xf]
    %v230 = vld [vmem:[%s6 + $0x8] sm:$0xf]
    %v231 = vld [vmem:[%s6 + $0xc] sm:$0xf]
    %v232 = vld [vmem:[%s6 + $0x10] sm:$0xf]
    %v233 = vld [vmem:[%s6 + $0x14] sm:$0xf]
    %v234 = vld [vmem:[%s6 + $0x18] sm:$0xf]
    %v235 = vld [vmem:[%s6 + $0x1c] sm:$0xf]
    %v244 = vunpack.c.l.b16 %v228
    %v245 = vunpack.c.l.b16 %v229
    %v246 = vunpack.c.l.b16 %v230
    %v247 = vunpack.c.l.b16 %v231
    %v248 = vunpack.c.l.b16 %v232
    %v249 = vunpack.c.l.b16 %v233
    %v250 = vunpack.c.l.b16 %v234
    %v251 = vunpack.c.l.b16 %v235
    %v252 = vpack.c.b16 %v245, %v244
    %v253 = vpack.c.b16 %v247, %v246
    %v254 = vpack.c.b16 %v249, %v248
    %v255 = vpack.c.b16 %v251, %v250
    %vm260 = vcmask 523264
    %v262 = vsel %vm260, %v227, 0
    %264 = vmatprep.subr.bf16.mxu0 0
    %265 = vmatpush1.bf16.msra.mxu0 %v252
    %266 = vmatprep.subr.bf16.mxu0 0
    %267 = vmatpush1.bf16.msra.mxu0 %v253
    %268 = vmatprep.subr.bf16.mxu0 0
    %269 = vmatpush1.bf16.msra.mxu0 %v254
    %270 = vmatprep.subr.bf16.mxu0 0
    %271 = vmatpush1.bf16.msra.mxu0 %v255
    %272 = vmatprep.subr.bf16.mxu0 0
    %273 = vmatpush1.bf16.msra.mxu0 0
    %274 = vmatprep.subr.bf16.mxu0 0
    %275 = vmatpush1.bf16.msra.mxu0 0
    %276 = vmatprep.subr.bf16.mxu0 0
    %277 = vmatpush1.bf16.msra.mxu0 0
    %278 = vmatprep.subr.bf16.mxu0 0
    %279 = vmatpush1.bf16.msra.mxu0 0
    %280 = vmatprep.subr.bf16.mxu0 0
    %281 = vmatpush1.bf16.msra.mxu0 0
    %282 = vmatprep.subr.bf16.mxu0 0
    %283 = vmatpush1.bf16.msra.mxu0 0
    %284 = vmatprep.subr.bf16.mxu0 0
    %285 = vmatpush1.bf16.msra.mxu0 0
    %286 = vmatprep.subr.bf16.mxu0 0
    %287 = vmatpush1.bf16.msra.mxu0 0
    %288 = vmatprep.subr.bf16.mxu0 0
    %289 = vmatpush1.bf16.msra.mxu0 0
    %290 = vmatprep.subr.bf16.mxu0 0
    %291 = vmatpush1.bf16.msra.mxu0 0
    %292 = vmatprep.subr.bf16.mxu0 0
    %293 = vmatpush1.bf16.msra.mxu0 0
    %294 = vmatprep.subr.bf16.mxu0 0
    %295 = vmatpush1.bf16.msra.mxu0 0
    %296 = vmatprep.mubr.bf16.mxu0 0
    %297 = vmatmul.mubr.bf16.gmra.mrb[0].mxu0 %v262
    %v298 = vpop.f32.mrb[0].mxu0
    %v299 = vadd.f32 0.0, %v298
    %v300 = vpop.f32.mrb[0].mxu0
    %v301 = vpop.f32.mrb[0].mxu0
    %v302 = vpop.f32.mrb[0].mxu0
    %303 = vdwg.mxu0
    %v304 = vld [vmem:[%s7] sm:$0x3]
    %306 = vset.pattern.permute.xlu0 0
    %307 = vperm.xlu0 %306, %v124
    %v308 = vpop.permute.xlu0 %307
    %v310 = vlaneseq
    %v311 = vshrl.u32 %v310, 7
    %v312 = vsub.s32 0, %v311
    %v313 = vrot.slane %v304, %v312
    %v314 = vmul.f32 %v308, %v313
    %v316 = vcombine.high %v314, %v314
    %v318 = vunpack.c.l.s4 1983009808
    %v319 = vunpack.c.0.s8 %v318
    %v320 = vlaneseq
    %v321 = vshrl.u32 %v320, 7
    %v322 = vsub.s32 %v319, %v321
    %v323 = vrot.slane %v314, %v322
    %v325 = vunpack.c.l.s4 1983009808
    %v326 = vunpack.c.0.s8 %v325
    %v327 = vlaneseq
    %v328 = vshrl.u32 %v327, 7
    %v329 = vsub.s32 %v326, %v328
    %v330 = vrot.slane %v316, %v329
    %v331 = vcombine.high %v323, %v323
    %v332 = vcombine.high %v330, %v330
    %v337 = vadd.f32 %v299, %v323
    %v338 = vadd.f32 %v299, %v331
    %v339 = vadd.f32 %v299, %v330
    %v340 = vadd.f32 %v299, %v332
    %341 = vset.pattern.permute.xlu0 1
    %342 = vperm.xlu0 %341, %v124
    %v343 = vpop.permute.xlu0 %342
    %v345 = vlaneseq
    %v346 = vshrl.u32 %v345, 7
    %v347 = vsub.s32 1, %v346
    %v348 = vrot.slane %v304, %v347
    %v349 = vmul.f32 %v343, %v348
    %v351 = vcombine.high %v349, %v349
    %v353 = vunpack.c.l.s4 1983009808
    %v354 = vunpack.c.0.s8 %v353
    %v355 = vlaneseq
    %v356 = vshrl.u32 %v355, 7
    %v357 = vsub.s32 %v354, %v356
    %v358 = vrot.slane %v349, %v357
    %v360 = vunpack.c.l.s4 1983009808
    %v361 = vunpack.c.0.s8 %v360
    %v362 = vlaneseq
    %v363 = vshrl.u32 %v362, 7
    %v364 = vsub.s32 %v361, %v363
    %v365 = vrot.slane %v351, %v364
    %v366 = vcombine.high %v358, %v358
    %v367 = vcombine.high %v365, %v365
    %v372 = vadd.f32 %v337, %v358
    %v373 = vadd.f32 %v338, %v366
    %v374 = vadd.f32 %v339, %v365
    %v375 = vadd.f32 %v340, %v367
    %v376 = vld [vmem:[%s8] sm:$0x1]
    %v378 = vlaneseq
    %v379 = vshrl.u32 %v378, 7
    %v380 = vsub.s32 0, %v379
    %v381 = vrot.slane %v376, %v380
    %v382 = vcombine.high %v381, %v381
    %v384 = vunpack.c.l.s4 1983009808
    %v385 = vunpack.c.0.s8 %v384
    %v386 = vlaneseq
    %v387 = vshrl.u32 %v386, 7
    %v388 = vsub.s32 %v385, %v387
    %v389 = vrot.slane %v381, %v388
    %v391 = vunpack.c.l.s4 1983009808
    %v392 = vunpack.c.0.s8 %v391
    %v393 = vlaneseq
    %v394 = vshrl.u32 %v393, 7
    %v395 = vsub.s32 %v392, %v394
    %v396 = vrot.slane %v382, %v395
    %v397 = vcombine.high %v389, %v389
    %v398 = vcombine.high %v396, %v396
    %v403 = vadd.f32 %v372, %v389
    %v404 = vadd.f32 %v373, %v397
    %v405 = vadd.f32 %v374, %v396
    %v406 = vadd.f32 %v375, %v398
    %v407 = vld [vmem:[%s9] sm:$0x1]
    %v408 = vld [vmem:[%s10] sm:$0x1]
    %v413 = vcombine.low %v403, %v404
    %v414 = vcombine.low %v405, %v406
    %v416 = vunpack.c.l.s4 1983009808
    %v417 = vunpack.c.0.s8 %v416
    %v418 = vlaneseq
    %v419 = vshrl.u32 %v418, 7
    %v420 = vsub.s32 %v417, %v419
    %v421 = vrot.slane %v413, %v420
    %v423 = vunpack.c.l.s4 1983009808
    %v424 = vunpack.c.0.s8 %v423
    %v425 = vlaneseq
    %v426 = vshrl.u32 %v425, 7
    %v427 = vsub.s32 %v424, %v426
    %v428 = vrot.slane %v414, %v427
    %v429 = vcombine.low %v421, %v428
    %431 = vadd.xlane.f32.xlu0 %v429
    %v432 = vpop.xlane.xlu0 %431
    %v433 = vmul.f32 %v403, %v403
    %v434 = vmul.f32 %v404, %v404
    %v435 = vmul.f32 %v405, %v405
    %v436 = vmul.f32 %v406, %v406
    %v441 = vcombine.low %v433, %v434
    %v442 = vcombine.low %v435, %v436
    %v444 = vunpack.c.l.s4 1983009808
    %v445 = vunpack.c.0.s8 %v444
    %v446 = vlaneseq
    %v447 = vshrl.u32 %v446, 7
    %v448 = vsub.s32 %v445, %v447
    %v449 = vrot.slane %v441, %v448
    %v451 = vunpack.c.l.s4 1983009808
    %v452 = vunpack.c.0.s8 %v451
    %v453 = vlaneseq
    %v454 = vshrl.u32 %v453, 7
    %v455 = vsub.s32 %v452, %v454
    %v456 = vrot.slane %v442, %v455
    %v457 = vcombine.low %v449, %v456
    %459 = vadd.xlane.f32.xlu0 %v457
    %v460 = vpop.xlane.xlu0 %459
    %v461 = vmul.f32 %v432, 0.0078125
    %v462 = vmul.f32 %v460, 0.0078125
    %v463 = vmul.f32 %v461, %v461
    %v464 = vsub.f32 %v462, %v463
    %v465 = vmax.f32 %v464, 0.0
    %v466 = vadd.f32 %v465, 1e-05
    %v467 = vrsqrt.pop %v466
    %v470 = vunpack.c.l.s4 269488144
    %v471 = vunpack.c.0.s8 %v470
    %v472 = vlaneseq
    %v473 = vshrl.u32 %v472, 7
    %v474 = vsub.s32 %v471, %v473
    %v475 = vrot.slane %v461, %v474
    %v477 = vunpack.c.l.s4 842150450
    %v478 = vunpack.c.0.s8 %v477
    %v479 = vlaneseq
    %v480 = vshrl.u32 %v479, 7
    %v481 = vsub.s32 %v478, %v480
    %v482 = vrot.slane %v461, %v481
    %v484 = vunpack.c.l.s4 1414812756
    %v485 = vunpack.c.0.s8 %v484
    %v486 = vlaneseq
    %v487 = vshrl.u32 %v486, 7
    %v488 = vsub.s32 %v485, %v487
    %v489 = vrot.slane %v461, %v488
    %v491 = vunpack.c.l.s4 1987475062
    %v492 = vunpack.c.0.s8 %v491
    %v493 = vlaneseq
    %v494 = vshrl.u32 %v493, 7
    %v495 = vsub.s32 %v492, %v494
    %v496 = vrot.slane %v461, %v495
    %v501 = vsub.f32 %v403, %v475
    %v502 = vsub.f32 %v404, %v482
    %v503 = vsub.f32 %v405, %v489
    %v504 = vsub.f32 %v406, %v496
    %v507 = vunpack.c.l.s4 269488144
    %v508 = vunpack.c.0.s8 %v507
    %v509 = vlaneseq
    %v510 = vshrl.u32 %v509, 7
    %v511 = vsub.s32 %v508, %v510
    %v512 = vrot.slane %v467, %v511
    %v514 = vunpack.c.l.s4 842150450
    %v515 = vunpack.c.0.s8 %v514
    %v516 = vlaneseq
    %v517 = vshrl.u32 %v516, 7
    %v518 = vsub.s32 %v515, %v517
    %v519 = vrot.slane %v467, %v518
    %v521 = vunpack.c.l.s4 1414812756
    %v522 = vunpack.c.0.s8 %v521
    %v523 = vlaneseq
    %v524 = vshrl.u32 %v523, 7
    %v525 = vsub.s32 %v522, %v524
    %v526 = vrot.slane %v467, %v525
    %v528 = vunpack.c.l.s4 1987475062
    %v529 = vunpack.c.0.s8 %v528
    %v530 = vlaneseq
    %v531 = vshrl.u32 %v530, 7
    %v532 = vsub.s32 %v529, %v531
    %v533 = vrot.slane %v467, %v532
    %v538 = vmul.f32 %v501, %v512
    %v539 = vmul.f32 %v502, %v519
    %v540 = vmul.f32 %v503, %v526
    %v541 = vmul.f32 %v504, %v533
    %v543 = vlaneseq
    %v544 = vshrl.u32 %v543, 7
    %v545 = vsub.s32 0, %v544
    %v546 = vrot.slane %v407, %v545
    %v547 = vcombine.high %v546, %v546
    %v549 = vunpack.c.l.s4 1983009808
    %v550 = vunpack.c.0.s8 %v549
    %v551 = vlaneseq
    %v552 = vshrl.u32 %v551, 7
    %v553 = vsub.s32 %v550, %v552
    %v554 = vrot.slane %v546, %v553
    %v556 = vunpack.c.l.s4 1983009808
    %v557 = vunpack.c.0.s8 %v556
    %v558 = vlaneseq
    %v559 = vshrl.u32 %v558, 7
    %v560 = vsub.s32 %v557, %v559
    %v561 = vrot.slane %v547, %v560
    %v562 = vcombine.high %v554, %v554
    %v563 = vcombine.high %v561, %v561
    %v568 = vmul.f32 %v538, %v554
    %v569 = vmul.f32 %v539, %v562
    %v570 = vmul.f32 %v540, %v561
    %v571 = vmul.f32 %v541, %v563
    %v573 = vlaneseq
    %v574 = vshrl.u32 %v573, 7
    %v575 = vsub.s32 0, %v574
    %v576 = vrot.slane %v408, %v575
    %v577 = vcombine.high %v576, %v576
    %v579 = vunpack.c.l.s4 1983009808
    %v580 = vunpack.c.0.s8 %v579
    %v581 = vlaneseq
    %v582 = vshrl.u32 %v581, 7
    %v583 = vsub.s32 %v580, %v582
    %v584 = vrot.slane %v576, %v583
    %v586 = vunpack.c.l.s4 1983009808
    %v587 = vunpack.c.0.s8 %v586
    %v588 = vlaneseq
    %v589 = vshrl.u32 %v588, 7
    %v590 = vsub.s32 %v587, %v589
    %v591 = vrot.slane %v577, %v590
    %v592 = vcombine.high %v584, %v584
    %v593 = vcombine.high %v591, %v591
    %v598 = vadd.f32 %v568, %v584
    %v599 = vadd.f32 %v569, %v592
    %v600 = vadd.f32 %v570, %v591
    %v601 = vadd.f32 %v571, %v593
    %v602 = vmax.f32 %v598, 0.0
    %v603 = vmax.f32 %v599, 0.0
    %v604 = vmax.f32 %v600, 0.0
    %v605 = vmax.f32 %v601, 0.0
    %v610 = vcombine.low %v602, %v603
    %v611 = vcombine.low %v604, %v605
    %v613 = vunpack.c.l.s4 1983009808
    %v614 = vunpack.c.0.s8 %v613
    %v615 = vlaneseq
    %v616 = vshrl.u32 %v615, 7
    %v617 = vsub.s32 %v614, %v616
    %v618 = vrot.slane %v610, %v617
    %v620 = vunpack.c.l.s4 1983009808
    %v621 = vunpack.c.0.s8 %v620
    %v622 = vlaneseq
    %v623 = vshrl.u32 %v622, 7
    %v624 = vsub.s32 %v621, %v623
    %v625 = vrot.slane %v611, %v624
    %v626 = vcombine.low %v618, %v625
    %v628 = vpack.c.bf16 %v626, %v626
    %v629 = vld [vmem:[#allocation11] sm:$0xf]
    %v630 = vld [vmem:[#allocation11 + $0x4] sm:$0xf]
    %v631 = vld [vmem:[#allocation11 + $0x8] sm:$0xf]
    %v632 = vld [vmem:[#allocation11 + $0xc] sm:$0xf]
    %v633 = vld [vmem:[#allocation11 + $0x10] sm:$0xf]
    %v634 = vld [vmem:[#allocation11 + $0x14] sm:$0xf]
    %v635 = vld [vmem:[#allocation11 + $0x18] sm:$0xf]
    %v636 = vld [vmem:[#allocation11 + $0x1c] sm:$0xf]
    %v637 = vld [vmem:[#allocation11 + $0x20] sm:$0xf]
    %v638 = vld [vmem:[#allocation11 + $0x24] sm:$0xf]
    %v639 = vld [vmem:[#allocation11 + $0x28] sm:$0xf]
    %v640 = vld [vmem:[#allocation11 + $0x2c] sm:$0xf]
    %v641 = vld [vmem:[#allocation11 + $0x30] sm:$0xf]
    %v642 = vld [vmem:[#allocation11 + $0x34] sm:$0xf]
    %v643 = vld [vmem:[#allocation11 + $0x38] sm:$0xf]
    %v644 = vld [vmem:[#allocation11 + $0x3c] sm:$0xf]
    %v645 = vld [vmem:[%s12] sm:$0x3]
    %v646 = vlaneseq
    %v647 = vshrl.u32 %v646, 7
    %v648 = vsub.s32 0, %v647
    %v649 = vrot.slane %v645, %v648
    %v650 = vmul.f32 %v308, %v649
    %v667 = vunpack.c.l.b16 %v629
    %v668 = vunpack.c.l.b16 %v630
    %v669 = vunpack.c.l.b16 %v631
    %v670 = vunpack.c.l.b16 %v632
    %v671 = vunpack.c.l.b16 %v633
    %v672 = vunpack.c.l.b16 %v634
    %v673 = vunpack.c.l.b16 %v635
    %v674 = vunpack.c.l.b16 %v636
    %v675 = vunpack.c.l.b16 %v637
    %v676 = vunpack.c.l.b16 %v638
    %v677 = vunpack.c.l.b16 %v639
    %v678 = vunpack.c.l.b16 %v640
    %v679 = vunpack.c.l.b16 %v641
    %v680 = vunpack.c.l.b16 %v642
    %v681 = vunpack.c.l.b16 %v643
    %v682 = vunpack.c.l.b16 %v644
    %v683 = vpack.c.b16 %v668, %v667
    %v684 = vpack.c.b16 %v670, %v669
    %v685 = vpack.c.b16 %v672, %v671
    %v686 = vpack.c.b16 %v674, %v673
    %v687 = vpack.c.b16 %v676, %v675
    %v688 = vpack.c.b16 %v678, %v677
    %v689 = vpack.c.b16 %v680, %v679
    %v690 = vpack.c.b16 %v682, %v681
    %699 = vmatprep.subr.bf16.mxu0 0
    %700 = vmatpush1.bf16.msra.mxu0 %v683
    %701 = vmatprep.subr.bf16.mxu0 0
    %702 = vmatpush1.bf16.msra.mxu0 %v684
    %703 = vmatprep.subr.bf16.mxu0 0
    %704 = vmatpush1.bf16.msra.mxu0 %v685
    %705 = vmatprep.subr.bf16.mxu0 0
    %706 = vmatpush1.bf16.msra.mxu0 %v686
    %707 = vmatprep.subr.bf16.mxu0 0
    %708 = vmatpush1.bf16.msra.mxu0 %v687
    %709 = vmatprep.subr.bf16.mxu0 0
    %710 = vmatpush1.bf16.msra.mxu0 %v688
    %711 = vmatprep.subr.bf16.mxu0 0
    %712 = vmatpush1.bf16.msra.mxu0 %v689
    %713 = vmatprep.subr.bf16.mxu0 0
    %714 = vmatpush1.bf16.msra.mxu0 %v690
    %715 = vmatprep.subr.bf16.mxu0 0
    %716 = vmatpush1.bf16.msra.mxu0 0
    %717 = vmatprep.subr.bf16.mxu0 0
    %718 = vmatpush1.bf16.msra.mxu0 0
    %719 = vmatprep.subr.bf16.mxu0 0
    %720 = vmatpush1.bf16.msra.mxu0 0
    %721 = vmatprep.subr.bf16.mxu0 0
    %722 = vmatpush1.bf16.msra.mxu0 0
    %723 = vmatprep.subr.bf16.mxu0 0
    %724 = vmatpush1.bf16.msra.mxu0 0
    %725 = vmatprep.subr.bf16.mxu0 0
    %726 = vmatpush1.bf16.msra.mxu0 0
    %727 = vmatprep.subr.bf16.mxu0 0
    %728 = vmatpush1.bf16.msra.mxu0 0
    %729 = vmatprep.subr.bf16.mxu0 0
    %730 = vmatpush1.bf16.msra.mxu0 0
    %731 = vmatprep.mubr.bf16.mxu0 0
    %732 = vmatmul.mubr.bf16.gmra.mrb[0].mxu0 %v628
    %v733 = vpop.f32.mrb[0].mxu0
    %v734 = vadd.f32 %v650, %v733
    %v735 = vpop.f32.mrb[0].mxu0
    %v736 = vpop.f32.mrb[0].mxu0
    %v737 = vpop.f32.mrb[0].mxu0
    %738 = vdwg.mxu0
    %v739 = vlaneseq
    %v740 = vshrl.u32 %v739, 7
    %v741 = vsub.s32 1, %v740
    %v742 = vrot.slane %v645, %v741
    %v743 = vmul.f32 %v343, %v742
    %v744 = vadd.f32 %v734, %v743
    %v745 = vld [vmem:[%s13] sm:$0x1]
    %v747 = vlaneseq
    %v748 = vshrl.u32 %v747, 7
    %v749 = vsub.s32 0, %v748
    %v750 = vrot.slane %v745, %v749
    %v752 = vadd.f32 %v744, %v750
    %753 = vst [vmem:[#allocation13] sm:$0xff] %v752
    // Predicated region
    $region82: #{tpu_custom_call.1} parent=1 // pred_check
      _
    $region83: #{tpu_custom_call.1} parent=1 // pred_check_branch
      %755 = sbr.rel (0) target = $region85
    $region84: #{tpu_custom_call.1} parent=1 // pred_region
      %s757 = ssub.s32 128, 128
      %758 = vsyncadd [#allocation4], %s757
      %s760 = sshll.u32 [#allocation13], 4
      %s761 = int_to_ptr.vmem [resolvable:$true] %s760
      %763 = dma.vmem_to_hbm [thread:$0]  %s761, 128, %s14, [#allocation4]
    $region85: #{tpu_custom_call.1} parent=1 // pred_fallthru
      _
    // Predicated region
    $region86: #{tpu_custom_call.1} parent=1 // pred_check
      _
    $region87: #{tpu_custom_call.1} parent=1 // pred_check_branch
      %765 = sbr.rel (0) target = $region89
    $region88: #{tpu_custom_call.1} parent=1 // pred_region
      %766 = dma.done [#allocation4], 128
    $region89: #{tpu_custom_call.1} parent=1 // pred_fallthru
      _
    %767 = vsyncpa [#allocation3], 1
    %768 = vsyncpa [#allocation6], 1
    %769 = vsyncpa [#allocation9], 1
    %770 = vsyncpa [#allocation12], 1
    %771 = vsyncpa [#allocation4], 1

</llo_original>
